<compile_context>
chip_gen: v5e
topology: v5e:2x2
jax: 0.10.0
libtpu: 0.0.40
codegen_flags: <defaults>
</compile_context>

<pallas_src>
import functools

import jax
import jax.numpy as jnp
from jax.experimental import pallas as pl
from jax.experimental.pallas import tpu as pltpu


def _round_up(x, m):
    return (x + m - 1) // m * m


def _pick_hidden_tile(H, target):
    """Largest multiple of 128 that divides H and is <= target; else full H."""
    cand = (min(target, H) // 128) * 128
    while cand >= 128:
        if H % cand == 0:
            return cand
        cand -= 128
    return H


def _ffn_kernel(x_ref, w13_ref, w2_ref, o_ref, acc_ref, *, th):
    # x_ref:   (TM, D)
    # w13_ref: (D, 2*TH)  -> [w1 tile | w3 tile] for hidden tile k
    # w2_ref:  (TH, D)
    # o_ref:   (TM, D)    (resident across the hidden-tile axis)
    # acc_ref: (TM, D) f32 scratch accumulator
    k = pl.program_id(1)

    @pl.when(k == 0)
    def _():
        acc_ref[...] = jnp.zeros_like(acc_ref)

    x = x_ref[...]
    # Fused gate/up projection: one wide MXU matmul for both w1 and w3.
    h = jnp.dot(x, w13_ref[...], preferred_element_type=jnp.float32)
    h1 = h[:, :th]
    h3 = h[:, th:]
    # SwiGLU gate in f32 (VPU/EUP).
    gated = (h1 * jax.nn.sigmoid(h1)) * h3
    # Down projection, f32 accumulation across hidden tiles.
    acc_ref[...] += jnp.dot(gated.astype(w2_ref.dtype), w2_ref[...],
                            preferred_element_type=jnp.float32)

    @pl.when(k == pl.num_programs(1) - 1)
    def _():
        o_ref[...] = acc_ref[...].astype(o_ref.dtype)


@functools.partial(jax.jit, static_argnames=("tm", "th"))
def feed_forward(x, w1_t, w3_t, w2_t, *, tm=128, th=512):
    """x: (B, S, D).  w1_t/w3_t: (D, H).  w2_t: (H, D)."""
    B, S, D = x.shape
    H = w1_t.shape[1]
    M = B * S
    dtype = x.dtype
    itemsize = jnp.dtype(dtype).itemsize
    sublane = 16 if itemsize == 2 else 8

    # Token tile: big (default 128) but never bigger than needed; sublane aligned.
    tm_eff = tm if M >= tm else M
    tm_eff = max(_round_up(tm_eff, sublane), sublane)
    Mp = _round_up(M, tm_eff)

    # Hidden tile: multiple of 128 that divides H (full H for tiny models).
    th_eff = _pick_hidden_tile(H, th)
    n_h = H // th_eff

    x2d = x.reshape(M, D)
    if Mp != M:
        x2d = jnp.pad(x2d, ((0, Mp - M), (0, 0)))

    # Interleave w1/w3 per hidden tile: column block k of w13 is
    # [w1[:, k*th:(k+1)*th] | w3[:, k*th:(k+1)*th]]  -> shape (D, 2*H).
    w13 = jnp.concatenate(
        [w1_t.reshape(D, n_h, th_eff), w3_t.reshape(D, n_h, th_eff)],
        axis=2).reshape(D, 2 * H)

    grid = (Mp // tm_eff, n_h)

    # VMEM budget: double-buffered input tiles + output tile + f32 accumulator.
    vmem_est = (2 * (tm_eff * D + D * 2 * th_eff + th_eff * D) * itemsize
                + 2 * tm_eff * D * itemsize
                + tm_eff * D * 4)
    # TODO(synk): budget clamped to 64 MiB so it is safe on v7x; v6e/v5e could
    # afford larger tiles / limits.
    vmem_limit = max(32 * 1024 * 1024,
                     min(int(vmem_est * 1.25) + (1 << 20), 64 * 1024 * 1024))

    cost = pl.CostEstimate(
        flops=6 * M * D * H,
        transcendentals=M * H,
        bytes_accessed=(M * D + 3 * D * H + M * D) * itemsize)

    out2d = pl.pallas_call(
        functools.partial(_ffn_kernel, th=th_eff),
        out_shape=jax.ShapeDtypeStruct((Mp, D), dtype),
        grid_spec=pltpu.PrefetchScalarGridSpec(
            num_scalar_prefetch=0,
            grid=grid,
            in_specs=[
                pl.BlockSpec((tm_eff, D), lambda i, k: (i, 0)),       # tokens
                pl.BlockSpec((D, 2 * th_eff), lambda i, k: (0, k)),   # [w1|w3] tile
                pl.BlockSpec((th_eff, D), lambda i, k: (k, 0)),       # w2 tile
            ],
            out_specs=pl.BlockSpec((tm_eff, D), lambda i, k: (i, 0)),
            scratch_shapes=[pltpu.VMEM((tm_eff, D), jnp.float32)],
        ),
        compiler_params=pltpu.CompilerParams(
            dimension_semantics=("parallel", "arbitrary"),
            vmem_limit_bytes=vmem_limit),
        cost_estimate=cost,
    )(x2d, w13, w2_t)

    if Mp != M:
        out2d = out2d[:M]
    return out2d.reshape(B, S, D)


def make_params(key, dim, multiple_of, dtype=jnp.float32):
    """Deterministic synthetic weights with the shapes implied by __init__."""
    hidden_dim = int(2 * (4 * dim) / 3)
    hidden_dim = multiple_of * ((hidden_dim + multiple_of - 1) // multiple_of)
    k1, k2, k3 = jax.random.split(key, 3)
    # PyTorch nn.Linear stores (out_features, in_features); keep that layout
    # here and transpose before calling the kernel.
    w1 = (jax.random.normal(k1, (hidden_dim, dim), jnp.float32)
          / jnp.sqrt(dim)).astype(dtype)
    w3 = (jax.random.normal(k2, (hidden_dim, dim), jnp.float32)
          / jnp.sqrt(dim)).astype(dtype)
    w2 = (jax.random.normal(k3, (dim, hidden_dim), jnp.float32)
          / jnp.sqrt(hidden_dim)).astype(dtype)
    return w1, w3, w2, hidden_dim


def reference(x, w1, w3, w2):
    """Pure-JAX reference matching the PyTorch forward exactly."""
    h1 = x @ w1.T
    h3 = x @ w3.T
    return (jax.nn.silu(h1) * h3) @ w2.T


if __name__ == "__main__":
    batch, seq = 2, 8

    # --- Test 1: f32, small dims (single hidden tile, tight tolerance) ---
    dim, multiple_of = 64, 64
    kx, kw = jax.random.split(jax.random.PRNGKey(0))
    w1, w3, w2, H = make_params(kw, dim, multiple_of, jnp.float32)
    x = jax.random.normal(kx, (batch, seq, dim), jnp.float32)
    out = jax.block_until_ready(feed_forward(x, w1.T, w3.T, w2.T))
    ref = reference(x, w1, w3, w2)
    assert out.shape == (batch, seq, dim)
    assert jnp.allclose(out, ref, atol=1e-4, rtol=1e-4), (
        float(jnp.max(jnp.abs(out - ref))))

    # --- Test 2: f32, larger hidden dim -> exercises the H-tiled accumulator ---
    dim, multiple_of = 256, 128
    kx2, kw2 = jax.random.split(jax.random.PRNGKey(1))
    w1, w3, w2, H = make_params(kw2, dim, multiple_of, jnp.float32)
    x = jax.random.normal(kx2, (batch, seq, dim), jnp.float32)
    out = jax.block_until_ready(feed_forward(x, w1.T, w3.T, w2.T, th=384))
    ref = reference(x, w1, w3, w2)
    assert jnp.allclose(out, ref, atol=2e-3, rtol=2e-3), (
        float(jnp.max(jnp.abs(out - ref))))

    # --- Test 3: bf16 activations/weights with f32 accumulation ---
    xb = x.astype(jnp.bfloat16)
    w1b, w3b, w2b = (w.astype(jnp.bfloat16) for w in (w1, w3, w2))
    outb = jax.block_until_ready(feed_forward(xb, w1b.T, w3b.T, w2b.T, th=384))
    refb = reference(xb.astype(jnp.float32), w1b.astype(jnp.float32),
                     w3b.astype(jnp.float32), w2b.astype(jnp.float32))
    assert outb.dtype == jnp.bfloat16
    assert jnp.allclose(outb.astype(jnp.float32), refb, atol=8e-2, rtol=8e-2), (
        float(jnp.max(jnp.abs(outb.astype(jnp.float32) - refb))))

    print("KERNEL_OK")
</pallas_src>

<mosaic_0001>
module attributes {stable_mosaic.version = 11 : i64} {
  func.func @_ffn_kernel(%arg0: i32, %arg1: i32, %arg2: memref<16x64xf32, #tpu.memory_space<vmem>>, %arg3: memref<64x384xf32, #tpu.memory_space<vmem>>, %arg4: memref<192x64xf32, #tpu.memory_space<vmem>>, %arg5: memref<16x64xf32, #tpu.memory_space<vmem>>, %arg6: memref<16x64xf32, #tpu.memory_space<vmem>>) attributes {dimension_semantics = [#tpu.dimension_semantics<parallel>, #tpu.dimension_semantics<arbitrary>], iteration_bounds = array<i64: 1, 1>, scalar_prefetch = 0 : i64, scratch_operands = 1 : i64, tpu.core_type = #tpu.core_type<tc>, window_params = [{transform_indices = @transform_0, window_bounds = array<i64: 16, 64>}, {transform_indices = @transform_1, window_bounds = array<i64: 64, 384>}, {transform_indices = @transform_2, window_bounds = array<i64: 192, 64>}, {transform_indices = @transform_3, window_bounds = array<i64: 16, 64>}]} {
    %c0_i32 = arith.constant 0 : i32
    %0 = arith.cmpi eq, %arg1, %c0_i32 : i32
    %1 = arith.extui %0 : i1 to i32
    %c0_i32_0 = arith.constant 0 : i32
    %2 = arith.cmpi ne, %1, %c0_i32_0 : i32
    scf.if %2 {
      %cst_14 = arith.constant 0.000000e+00 : f32
      %23 = vector.broadcast %cst_14 : f32 to vector<16x64xf32>
      %c0_15 = arith.constant 0 : index
      %c0_16 = arith.constant 0 : index
      %24 = vector.load %arg6[%c0_15, %c0_16] : memref<16x64xf32, #tpu.memory_space<vmem>>, vector<16x64xf32>
      tpu.vector_store %arg6[%c0_15, %c0_16], %23 {strides = array<i32>} : memref<16x64xf32, #tpu.memory_space<vmem>>, vector<16x64xf32>,
    } else {
    }
    %c0 = arith.constant 0 : index
    %c0_1 = arith.constant 0 : index
    %3 = vector.load %arg2[%c0, %c0_1] : memref<16x64xf32, #tpu.memory_space<vmem>>, vector<16x64xf32>
    %c0_2 = arith.constant 0 : index
    %c0_3 = arith.constant 0 : index
    %4 = vector.load %arg3[%c0_2, %c0_3] : memref<64x384xf32, #tpu.memory_space<vmem>>, vector<64x384xf32>
    %cst = arith.constant dense<0.000000e+00> : vector<16x384xf32>
    %5 = tpu.matmul %3, %4, %cst {dimension_numbers = #tpu.dot_dimension_numbers<[1], [0], [0], [1], [0, 0, 1, 1], [], []>} : vector<16x64xf32>, vector<64x384xf32>, vector<16x384xf32> -> vector<16x384xf32>
    %6 = vector.extract_strided_slice %5 {offsets = [0, 0], sizes = [16, 192], strides = [1, 1]} : vector<16x384xf32> to vector<16x192xf32>
    %7 = vector.extract_strided_slice %5 {offsets = [0, 192], sizes = [16, 192], strides = [1, 1]} : vector<16x384xf32> to vector<16x192xf32>
    %8 = arith.negf %6 : vector<16x192xf32>
    %9 = math.exp %8 : vector<16x192xf32>
    %cst_4 = arith.constant 1.000000e+00 : f32
    %10 = vector.broadcast %cst_4 : f32 to vector<16x192xf32>
    %11 = arith.addf %10, %9 : vector<16x192xf32>
    %12 = arith.divf %10, %11 : vector<16x192xf32>
    %13 = arith.mulf %6, %12 : vector<16x192xf32>
    %14 = arith.mulf %13, %7 : vector<16x192xf32>
    %c0_5 = arith.constant 0 : index
    %c0_6 = arith.constant 0 : index
    %15 = vector.load %arg6[%c0_5, %c0_6] : memref<16x64xf32, #tpu.memory_space<vmem>>, vector<16x64xf32>
    %c0_7 = arith.constant 0 : index
    %c0_8 = arith.constant 0 : index
    %16 = vector.load %arg4[%c0_7, %c0_8] : memref<192x64xf32, #tpu.memory_space<vmem>>, vector<192x64xf32>
    %cst_9 = arith.constant dense<0.000000e+00> : vector<16x64xf32>
    %17 = tpu.matmul %14, %16, %cst_9 {dimension_numbers = #tpu.dot_dimension_numbers<[1], [0], [0], [1], [0, 0, 1, 1], [], []>} : vector<16x192xf32>, vector<192x64xf32>, vector<16x64xf32> -> vector<16x64xf32>
    %18 = arith.addf %15, %17 : vector<16x64xf32>
    %c0_10 = arith.constant 0 : index
    %c0_11 = arith.constant 0 : index
    %19 = vector.load %arg6[%c0_10, %c0_11] : memref<16x64xf32, #tpu.memory_space<vmem>>, vector<16x64xf32>
    tpu.vector_store %arg6[%c0_10, %c0_11], %18 {strides = array<i32>} : memref<16x64xf32, #tpu.memory_space<vmem>>, vector<16x64xf32>,
    %c0_i32_12 = arith.constant 0 : i32
    %20 = arith.cmpi eq, %arg1, %c0_i32_12 : i32
    %21 = arith.extui %20 : i1 to i32
    %c0_i32_13 = arith.constant 0 : i32
    %22 = arith.cmpi ne, %21, %c0_i32_13 : i32
    scf.if %22 {
      %c0_14 = arith.constant 0 : index
      %c0_15 = arith.constant 0 : index
      %23 = vector.load %arg6[%c0_14, %c0_15] : memref<16x64xf32, #tpu.memory_space<vmem>>, vector<16x64xf32>
      %c0_16 = arith.constant 0 : index
      %c0_17 = arith.constant 0 : index
      %24 = vector.load %arg5[%c0_16, %c0_17] : memref<16x64xf32, #tpu.memory_space<vmem>>, vector<16x64xf32>
      tpu.vector_store %arg5[%c0_16, %c0_17], %23 {strides = array<i32>} : memref<16x64xf32, #tpu.memory_space<vmem>>, vector<16x64xf32>,
    } else {
    }
    return
  }
  func.func @transform_0(%arg0: i32, %arg1: i32) -> (i32, i32) {
    %c0_i32 = arith.constant 0 : i32
    %c0_i32_0 = arith.constant 0 : i32
    return %arg0, %c0_i32 : i32, i32
  }
  func.func @transform_1(%arg0: i32, %arg1: i32) -> (i32, i32) {
    %c0_i32 = arith.constant 0 : i32
    %c0_i32_0 = arith.constant 0 : i32
    return %c0_i32, %arg1 : i32, i32
  }
  func.func @transform_2(%arg0: i32, %arg1: i32) -> (i32, i32) {
    %c0_i32 = arith.constant 0 : i32
    %c0_i32_0 = arith.constant 0 : i32
    return %arg1, %c0_i32 : i32, i32
  }
  func.func @transform_3(%arg0: i32, %arg1: i32) -> (i32, i32) {
    %c0_i32 = arith.constant 0 : i32
    %c0_i32_0 = arith.constant 0 : i32
    return %arg0, %c0_i32 : i32, i32
  }
}

</mosaic_0001>

<llo_original>
// kernel: feed_forward.1
$region0: #{feed_forward.1}
  #allocation0 [shape = 'u32[]', space=smem, size = 0x4, offset = 0x4, fixed_abs, tag = 'smem constant byte address 0x4 - core index']
  #allocation1 [shape = 'u32[72,128]{1,0:T(1,128)}', space=vmem, size = 0x9000, scoped, tag = 'internal scratch']
  #allocation2 [shape = 'f32[16,64]{1,0:T(8,128)}', space=vmem, size = 0x2000, scoped, tag = 'scratch operand']
  %s0 = inlined_call_operand.vmem [shape: f32[16,64], index: 0, kind: input, shape index: {}]
  %s1 = inlined_call_operand.vmem [shape: f32[64,384], index: 1, kind: input, shape index: {}]
  %s2 = inlined_call_operand.vmem [shape: f32[192,64], index: 2, kind: input, shape index: {}]
  %s3 = inlined_call_operand.hbm [shape: f32[16,64], index: 3, kind: output, shape index: {}]
  %s4 = sld [smem:[#allocation0]]
  $region30: #{feed_forward.1} parent=0
    _
  %s6 = ssub.s32 1, %s4
  %s7 = scalar_select 0, %s6, %s4
  $region1: #{feed_forward.1} parent=0
    #allocation3 [shape = 'u8[8192]{0}', space=vmem, size = 0x2000, scoped, tag = 'output window, operand 0, single buffered']
    #allocation4 [shape = 's32[1]{0}', space=sflag, size = 0x4, scoped, tag = 'scoped memory for feed_forward.1']
    %8 = vsyncpa [#allocation4], 0
    // Predicated region
    $region2: #{feed_forward.1} parent=1 // pred_check
      _
    $region3: #{feed_forward.1} parent=1 // pred_check_branch
      %10 = sbr.rel (0) target = $region5
    $region4: #{feed_forward.1} parent=1 // pred_region
      _
    $region5: #{feed_forward.1} parent=1 // pred_fallthru
      _
    // Predicated region
    $region6: #{feed_forward.1} parent=1 // pred_check
      _
    $region7: #{feed_forward.1} parent=1 // pred_check_branch
      %12 = sbr.rel (0) target = $region9
    $region8: #{feed_forward.1} parent=1 // pred_region
      _
    $region9: #{feed_forward.1} parent=1 // pred_fallthru
      _
    // Predicated region
    $region10: #{feed_forward.1} parent=1 // pred_check
      _
    $region11: #{feed_forward.1} parent=1 // pred_check_branch
      %14 = sbr.rel (0) target = $region13
    $region12: #{feed_forward.1} parent=1 // pred_region
      _
    $region13: #{feed_forward.1} parent=1 // pred_fallthru
      _
    %p15 = scmp.eq.s32.totalorder 0, 0
    // Predicated region
    $region14: #{feed_forward.1} parent=1 // pred_check
      %p16 = pneg %p15
    $region15: #{feed_forward.1} parent=1 // pred_check_branch
      %18 = sbr.rel (%p16) target = $region17
    $region16: #{feed_forward.1} parent=1 // pred_region
      %vm19 = vcmask 523264
      %20 = vst.msk [vmem:[#allocation2] sm:$0xff] %vm19, 0.0
      %21 = vst.msk [vmem:[#allocation2 + $0x8] sm:$0xff] %vm19, 0.0
    $region17: #{feed_forward.1} parent=1 // pred_fallthru
      _
    %v22 = vld [vmem:[%s0] sm:$0xff]
    %v23 = vld [vmem:[%s0 + $0x8] sm:$0xff]
    %v24 = vld [vmem:[%s1] sm:$0xff]
    %v25 = vld [vmem:[%s1 + $0x8] sm:$0xff]
    %v26 = vld [vmem:[%s1 + $0x10] sm:$0xff]
    %v27 = vld [vmem:[%s1 + $0x18] sm:$0xff]
    %v28 = vld [vmem:[%s1 + $0x20] sm:$0xff]
    %v29 = vld [vmem:[%s1 + $0x28] sm:$0xff]
    %v30 = vld [vmem:[%s1 + $0x30] sm:$0xff]
    %v31 = vld [vmem:[%s1 + $0x38] sm:$0xff]
    %v32 = vld [vmem:[%s1 + $0x40] sm:$0xff]
    %v33 = vld [vmem:[%s1 + $0x48] sm:$0xff]
    %v34 = vld [vmem:[%s1 + $0x50] sm:$0xff]
    %v35 = vld [vmem:[%s1 + $0x58] sm:$0xff]
    %v36 = vld [vmem:[%s1 + $0x60] sm:$0xff]
    %v37 = vld [vmem:[%s1 + $0x68] sm:$0xff]
    %v38 = vld [vmem:[%s1 + $0x70] sm:$0xff]
    %v39 = vld [vmem:[%s1 + $0x78] sm:$0xff]
    %v40 = vld [vmem:[%s1 + $0x80] sm:$0xff]
    %v41 = vld [vmem:[%s1 + $0x88] sm:$0xff]
    %v42 = vld [vmem:[%s1 + $0x90] sm:$0xff]
    %v43 = vld [vmem:[%s1 + $0x98] sm:$0xff]
    %v44 = vld [vmem:[%s1 + $0xa0] sm:$0xff]
    %v45 = vld [vmem:[%s1 + $0xa8] sm:$0xff]
    %v46 = vld [vmem:[%s1 + $0xb0] sm:$0xff]
    %v47 = vld [vmem:[%s1 + $0xb8] sm:$0xff]
    %vm48 = vcmask 523264
    %v50 = vsel %vm48, %v22, 0
    %v53 = vsel %vm48, %v23, 0
    %55 = vmatpush.msra.mxu0 0.0
    %56 = vmatpush.msra.mxu0 0.0
    %57 = vmatpush.msra.mxu0 0.0
    %58 = vmatpush.msra.mxu0 0.0
    %59 = vmatpush.msra.mxu0 0.0
    %60 = vmatpush.msra.mxu0 0.0
    %61 = vmatpush.msra.mxu0 0.0
    %62 = vmatpush.msra.mxu0 0.0
    %63 = vmatpush.msra.mxu0 %v45
    %64 = vmatpush.msra.mxu0 %v42
    %65 = vmatpush.msra.mxu0 %v39
    %66 = vmatpush.msra.mxu0 %v36
    %67 = vmatpush.msra.mxu0 %v33
    %68 = vmatpush.msra.mxu0 %v30
    %69 = vmatpush.msra.mxu0 %v27
    %70 = vmatpush.msra.mxu0 %v24
    %71 = vmatmul.f32.gmra.mxu0 %v50
    %v72 = vpop.f32.mrf.mxu0
    %v73 = vadd.f32 0.0, %v72
    %74 = vmatmul.f32.gmra.mxu0 %v53
    %v75 = vpop.f32.mrf.mxu0
    %v76 = vadd.f32 0.0, %v75
    %77 = vdwg.mxu0
    %78 = vmatpush.msra.mxu0 0.0
    %79 = vmatpush.msra.mxu0 0.0
    %80 = vmatpush.msra.mxu0 0.0
    %81 = vmatpush.msra.mxu0 0.0
    %82 = vmatpush.msra.mxu0 0.0
    %83 = vmatpush.msra.mxu0 0.0
    %84 = vmatpush.msra.mxu0 0.0
    %85 = vmatpush.msra.mxu0 0.0
    %86 = vmatpush.msra.mxu0 %v46
    %87 = vmatpush.msra.mxu0 %v43
    %88 = vmatpush.msra.mxu0 %v40
    %89 = vmatpush.msra.mxu0 %v37
    %90 = vmatpush.msra.mxu0 %v34
    %91 = vmatpush.msra.mxu0 %v31
    %92 = vmatpush.msra.mxu0 %v28
    %93 = vmatpush.msra.mxu0 %v25
    %94 = vmatmul.f32.gmra.mxu0 %v50
    %v95 = vpop.f32.mrf.mxu0
    %v96 = vadd.f32 0.0, %v95
    %97 = vmatmul.f32.gmra.mxu0 %v53
    %v98 = vpop.f32.mrf.mxu0
    %v99 = vadd.f32 0.0, %v98
    %100 = vdwg.mxu0
    %101 = vmatpush.msra.mxu0 0.0
    %102 = vmatpush.msra.mxu0 0.0
    %103 = vmatpush.msra.mxu0 0.0
    %104 = vmatpush.msra.mxu0 0.0
    %105 = vmatpush.msra.mxu0 0.0
    %106 = vmatpush.msra.mxu0 0.0
    %107 = vmatpush.msra.mxu0 0.0
    %108 = vmatpush.msra.mxu0 0.0
    %109 = vmatpush.msra.mxu0 %v47
    %110 = vmatpush.msra.mxu0 %v44
    %111 = vmatpush.msra.mxu0 %v41
    %112 = vmatpush.msra.mxu0 %v38
    %113 = vmatpush.msra.mxu0 %v35
    %114 = vmatpush.msra.mxu0 %v32
    %115 = vmatpush.msra.mxu0 %v29
    %116 = vmatpush.msra.mxu0 %v26
    %117 = vmatmul.f32.gmra.mxu0 %v50
    %v118 = vpop.f32.mrf.mxu0
    %v119 = vadd.f32 0.0, %v118
    %120 = vmatmul.f32.gmra.mxu0 %v53
    %v121 = vpop.f32.mrf.mxu0
    %v122 = vadd.f32 0.0, %v121
    %123 = vdwg.mxu0
    %v124 = vxor.u32 %v73, 2147483648
    %v125 = vxor.u32 %v96, 2147483648
    %v126 = vxor.u32 %v76, 2147483648
    %v127 = vxor.u32 %v99, 2147483648
    %v128 = vmul.f32 %v124, 1.442695
    %v129 = vpow.pop %v128
    %v130 = vmul.f32 %v125, 1.442695
    %v131 = vpow.pop %v130
    %v132 = vmul.f32 %v126, 1.442695
    %v133 = vpow.pop %v132
    %v134 = vmul.f32 %v127, 1.442695
    %v135 = vpow.pop %v134
    %v136 = vadd.f32 %v129, 1.0
    %v137 = vadd.f32 %v131, 1.0
    %v138 = vadd.f32 %v133, 1.0
    %v139 = vadd.f32 %v135, 1.0
    %v140 = vrcp.pop %v136
    %v141 = vmul.f32 %v136, %v140
    %v142 = vsub.f32 1.0, %v141
    %v143 = vmul.f32 %v140, %v142
    %v144 = vadd.f32 %v140, %v143
    %vm145 = vweird.f32 %v136
    %vm146 = vweird.f32 %v140
    %vm147 = vmor %vm145, %vm146
    %v148 = vsel %vm147, %v140, %v144
    %v149 = vand.u32 2147483647, %v136
    %vm150 = vcmp.eq.f32.partialorder %v149, 8.507059e+37
    %v151 = vand.u32 %v136, 2147483648
    %v152 = vor.u32 1.1754944e-38, %v151
    %v153 = vsel %vm150, %v152, %v148
    %v154 = vmul.f32 1.0, %v153
    %v155 = vrcp.pop %v137
    %v156 = vmul.f32 %v137, %v155
    %v157 = vsub.f32 1.0, %v156
    %v158 = vmul.f32 %v155, %v157
    %v159 = vadd.f32 %v155, %v158
    %vm160 = vweird.f32 %v137
    %vm161 = vweird.f32 %v155
    %vm162 = vmor %vm160, %vm161
    %v163 = vsel %vm162, %v155, %v159
    %v164 = vand.u32 2147483647, %v137
    %vm165 = vcmp.eq.f32.partialorder %v164, 8.507059e+37
    %v166 = vand.u32 %v137, 2147483648
    %v167 = vor.u32 1.1754944e-38, %v166
    %v168 = vsel %vm165, %v167, %v163
    %v169 = vmul.f32 1.0, %v168
    %v170 = vrcp.pop %v138
    %v171 = vmul.f32 %v138, %v170
    %v172 = vsub.f32 1.0, %v171
    %v173 = vmul.f32 %v170, %v172
    %v174 = vadd.f32 %v170, %v173
    %vm175 = vweird.f32 %v138
    %vm176 = vweird.f32 %v170
    %vm177 = vmor %vm175, %vm176
    %v178 = vsel %vm177, %v170, %v174
    %v179 = vand.u32 2147483647, %v138
    %vm180 = vcmp.eq.f32.partialorder %v179, 8.507059e+37
    %v181 = vand.u32 %v138, 2147483648
    %v182 = vor.u32 1.1754944e-38, %v181
    %v183 = vsel %vm180, %v182, %v178
    %v184 = vmul.f32 1.0, %v183
    %v185 = vrcp.pop %v139
    %v186 = vmul.f32 %v139, %v185
    %v187 = vsub.f32 1.0, %v186
    %v188 = vmul.f32 %v185, %v187
    %v189 = vadd.f32 %v185, %v188
    %vm190 = vweird.f32 %v139
    %vm191 = vweird.f32 %v185
    %vm192 = vmor %vm190, %vm191
    %v193 = vsel %vm192, %v185, %v189
    %v194 = vand.u32 2147483647, %v139
    %vm195 = vcmp.eq.f32.partialorder %v194, 8.507059e+37
    %v196 = vand.u32 %v139, 2147483648
    %v197 = vor.u32 1.1754944e-38, %v196
    %v198 = vsel %vm195, %v197, %v193
    %v199 = vmul.f32 1.0, %v198
    %v200 = vmul.f32 %v73, %v154
    %v201 = vmul.f32 %v96, %v169
    %v202 = vmul.f32 %v76, %v184
    %v203 = vmul.f32 %v99, %v199
    %208 = vrot.lane.b32.xlu0 %v96, 64
    %v209 = vpop.permute.xlu0 %208
    %210 = vrot.lane.b32.xlu0 %v119, 64
    %v211 = vpop.permute.xlu0 %210
    %212 = vrot.lane.b32.xlu0 %v99, 64
    %v213 = vpop.permute.xlu0 %212
    %214 = vrot.lane.b32.xlu0 %v122, 64
    %v215 = vpop.permute.xlu0 %214
    %v216 = vsel %vm48, %v209, %v211
    %v217 = vsel %vm48, %v213, %v215
    %v222 = vmul.f32 %v200, %v216
    %v223 = vmul.f32 %v201, %v211
    %v224 = vmul.f32 %v202, %v217
    %v225 = vmul.f32 %v203, %v215
    %v226 = vld [vmem:[#allocation2] sm:$0xff]
    %v227 = vld [vmem:[#allocation2 + $0x8] sm:$0xff]
    %v228 = vld [vmem:[%s2] sm:$0xff]
    %v229 = vld [vmem:[%s2 + $0x8] sm:$0xff]
    %v230 = vld [vmem:[%s2 + $0x10] sm:$0xff]
    %v231 = vld [vmem:[%s2 + $0x18] sm:$0xff]
    %v232 = vld [vmem:[%s2 + $0x20] sm:$0xff]
    %v233 = vld [vmem:[%s2 + $0x28] sm:$0xff]
    %v234 = vld [vmem:[%s2 + $0x30] sm:$0xff]
    %v235 = vld [vmem:[%s2 + $0x38] sm:$0xff]
    %v236 = vld [vmem:[%s2 + $0x40] sm:$0xff]
    %v237 = vld [vmem:[%s2 + $0x48] sm:$0xff]
    %v238 = vld [vmem:[%s2 + $0x50] sm:$0xff]
    %v239 = vld [vmem:[%s2 + $0x58] sm:$0xff]
    %v240 = vld [vmem:[%s2 + $0x60] sm:$0xff]
    %v241 = vld [vmem:[%s2 + $0x68] sm:$0xff]
    %v242 = vld [vmem:[%s2 + $0x70] sm:$0xff]
    %v243 = vld [vmem:[%s2 + $0x78] sm:$0xff]
    %v244 = vld [vmem:[%s2 + $0x80] sm:$0xff]
    %v245 = vld [vmem:[%s2 + $0x88] sm:$0xff]
    %v246 = vld [vmem:[%s2 + $0x90] sm:$0xff]
    %v247 = vld [vmem:[%s2 + $0x98] sm:$0xff]
    %v248 = vld [vmem:[%s2 + $0xa0] sm:$0xff]
    %v249 = vld [vmem:[%s2 + $0xa8] sm:$0xff]
    %v250 = vld [vmem:[%s2 + $0xb0] sm:$0xff]
    %v251 = vld [vmem:[%s2 + $0xb8] sm:$0xff]
    %v253 = vsel %vm48, %v223, 0
    %v256 = vsel %vm48, %v225, 0
    %258 = vmatpush.msra.mxu0 %v243
    %259 = vmatpush.msra.mxu0 %v242
    %260 = vmatpush.msra.mxu0 %v241
    %261 = vmatpush.msra.mxu0 %v240
    %262 = vmatpush.msra.mxu0 %v239
    %263 = vmatpush.msra.mxu0 %v238
    %264 = vmatpush.msra.mxu0 %v237
    %265 = vmatpush.msra.mxu0 %v236
    %266 = vmatpush.msra.mxu0 %v235
    %267 = vmatpush.msra.mxu0 %v234
    %268 = vmatpush.msra.mxu0 %v233
    %269 = vmatpush.msra.mxu0 %v232
    %270 = vmatpush.msra.mxu0 %v231
    %271 = vmatpush.msra.mxu0 %v230
    %272 = vmatpush.msra.mxu0 %v229
    %273 = vmatpush.msra.mxu0 %v228
    %274 = vmatmul.f32.gmra.mxu0 %v222
    %v275 = vpop.f32.mrf.mxu0
    %v276 = vadd.f32 0.0, %v275
    %277 = vmatmul.f32.gmra.mxu0 %v224
    %v278 = vpop.f32.mrf.mxu0
    %v279 = vadd.f32 0.0, %v278
    %280 = vdwg.mxu0
    %281 = vmatpush.msra.mxu0 0.0
    %282 = vmatpush.msra.mxu0 0.0
    %283 = vmatpush.msra.mxu0 0.0
    %284 = vmatpush.msra.mxu0 0.0
    %285 = vmatpush.msra.mxu0 0.0
    %286 = vmatpush.msra.mxu0 0.0
    %287 = vmatpush.msra.mxu0 0.0
    %288 = vmatpush.msra.mxu0 0.0
    %289 = vmatpush.msra.mxu0 %v251
    %290 = vmatpush.msra.mxu0 %v250
    %291 = vmatpush.msra.mxu0 %v249
    %292 = vmatpush.msra.mxu0 %v248
    %293 = vmatpush.msra.mxu0 %v247
    %294 = vmatpush.msra.mxu0 %v246
    %295 = vmatpush.msra.mxu0 %v245
    %296 = vmatpush.msra.mxu0 %v244
    %297 = vmatmul.f32.gmra.mxu0 %v253
    %v298 = vpop.f32.mrf.mxu0
    %v299 = vadd.f32 %v276, %v298
    %300 = vmatmul.f32.gmra.mxu0 %v256
    %v301 = vpop.f32.mrf.mxu0
    %v302 = vadd.f32 %v279, %v301
    %303 = vdwg.mxu0
    %v304 = vadd.f32 %v226, %v299
    %v305 = vadd.f32 %v227, %v302
    %306 = vst.msk [vmem:[#allocation2] sm:$0xff] %vm48, %v304
    %307 = vst.msk [vmem:[#allocation2 + $0x8] sm:$0xff] %vm48, %v305
    // Predicated region
    $region18: #{feed_forward.1} parent=1 // pred_check
      %p308 = pneg %p15
    $region19: #{feed_forward.1} parent=1 // pred_check_branch
      %310 = sbr.rel (%p308) target = $region21
    $region20: #{feed_forward.1} parent=1 // pred_region
      %v311 = vld [vmem:[#allocation2] sm:$0xff]
      %v312 = vld [vmem:[#allocation2 + $0x8] sm:$0xff]
      %313 = vst.msk [vmem:[#allocation3] sm:$0xff] %vm48, %v311
      %314 = vst.msk [vmem:[#allocation3 + $0x8] sm:$0xff] %vm48, %v312
    $region21: #{feed_forward.1} parent=1 // pred_fallthru
      _
    // Predicated region
    $region22: #{feed_forward.1} parent=1 // pred_check
      _
    $region23: #{feed_forward.1} parent=1 // pred_check_branch
      %316 = sbr.rel (0) target = $region25
    $region24: #{feed_forward.1} parent=1 // pred_region
      %318 = vsyncadd [#allocation4], 0
      %s319 = sshll.u32 [#allocation3], 4
      %s320 = int_to_ptr.vmem [resolvable:$true] %s319
      %s321 = sshll.u32 %s3, 4
      %s322 = int_to_ptr.hbm [resolvable:$true] %s321
      %327 = dma.vmem_to_hbm [thread:$0]  %s320, 256, %s322, [#allocation4], 128, 128, 8
    $region25: #{feed_forward.1} parent=1 // pred_fallthru
      _
    // Predicated region
    $region26: #{feed_forward.1} parent=1 // pred_check
      _
    $region27: #{feed_forward.1} parent=1 // pred_check_branch
      %329 = sbr.rel (0) target = $region29
    $region28: #{feed_forward.1} parent=1 // pred_region
      %331 = dma.done [#allocation4], 256
    $region29: #{feed_forward.1} parent=1 // pred_fallthru
      _
    %332 = vsyncpa [#allocation4], 1

</llo_original>
